<compile_context>
chip_gen: v5e
topology: v5e:2x2
jax: 0.10.0
libtpu: 0.0.40
codegen_flags: <defaults>
</compile_context>

<pallas_src>
import functools

import jax
import jax.numpy as jnp
from jax import lax
from jax.experimental import pallas as pl
from jax.experimental.pallas import tpu as pltpu

KSIZE = 7
PAD = 3
LANES = 128
MAX_NB = 32  # max batch rows per grid step


def _spatial_attention_kernel(x_ref, m_ref, o_ref, acc_ref, *,
                              hwp, c_total, c_tile, mask_channels):
    # x_ref:   (NB, CT, HWp)   input tile (input dtype)
    # m_ref:   (2*HWp, HWp)    fused conv matrix (bf16, avg block pre-scaled 1/C)
    # o_ref:   (NB, HWp)       output tile
    # acc_ref: (NB, 2*HWp) f32 accumulator: lanes [0,HWp) = channel sum,
    #                          lanes [HWp,2*HWp) = running channel max.
    c_idx = pl.program_id(1)
    nb = acc_ref.shape[0]
    neg_big = jnp.finfo(jnp.float32).min  # finite "‑inf" (avoids inf*0 -> NaN)

    @pl.when(c_idx == 0)
    def _init():
        acc_ref[:, :hwp] = jnp.zeros((nb, hwp), acc_ref.dtype)
        acc_ref[:, hwp:] = jnp.full((nb, hwp), neg_big, acc_ref.dtype)

    # Single load of the channel tile feeds both the sum and the running max.
    x = x_ref[...]                                            # (NB, CT, HWp)
    if mask_channels:
        ch = c_idx * c_tile + lax.broadcasted_iota(jnp.int32, x.shape, 1)
        x_for_max = jnp.where(ch < c_total, x, jnp.finfo(x.dtype).min)
    else:
        x_for_max = x

    # Sum in f32 (zero channel padding is harmless); max in the input dtype
    # (dtype-aware path), upcast only for the f32 accumulator.
    acc_ref[:, :hwp] += jnp.sum(x.astype(jnp.float32), axis=1)
    acc_ref[:, hwp:] = jnp.maximum(
        acc_ref[:, hwp:], jnp.max(x_for_max, axis=1).astype(jnp.float32))

    @pl.when(c_idx == pl.num_programs(1) - 1)
    def _finalize():
        # One MXU matmul: [sum | max] @ [[M_avg/C], [M_max]]  (bf16 x bf16 -> f32).
        lhs = acc_ref[...].astype(m_ref.dtype)                # (NB, 2*HWp)
        y = jnp.dot(lhs, m_ref[...], preferred_element_type=jnp.float32)
        o_ref[...] = jax.nn.sigmoid(y).astype(o_ref.dtype)


def _build_conv_matrix(weight, H, W, HWp, inv_c, dtype):
    """Fused dense conv matrix M of shape (2*HWp, HWp):
       rows [0,HWp)    : avg-path Toeplitz block, pre-scaled by 1/C,
       rows [HWp,2*HWp): max-path Toeplitz block,
    so y_flat = concat([sum_flat, max_flat], -1) @ M reproduces the 'same'-padded
    7x7 conv of cat([mean, max]) in one matmul."""
    weight = weight.astype(jnp.float32)
    hi = jnp.arange(H)
    wi = jnp.arange(W)
    dh = hi[:, None] - hi[None, :] + PAD                      # (H, H): kh index
    dw = wi[:, None] - wi[None, :] + PAD                      # (W, W): kw index
    vh = (dh >= 0) & (dh < KSIZE)
    vw = (dw >= 0) & (dw < KSIZE)
    dh = jnp.clip(dh, 0, KSIZE - 1)
    dw = jnp.clip(dw, 0, KSIZE - 1)
    # m[c, hi, ho, wi, wo] = weight[c, dh[hi, ho], dw[wi, wo]] (masked)
    m = weight[:, dh[:, :, None, None], dw[None, None, :, :]]          # (2,H,H,W,W)
    m = m * (vh[:, :, None, None] & vw[None, None, :, :])
    m = jnp.transpose(m, (0, 1, 3, 2, 4)).reshape(2, H * W, H * W)     # (2, i, o)
    m = m * jnp.array([inv_c, 1.0], jnp.float32)[:, None, None]        # fold 1/C
    m = jnp.pad(m, ((0, 0), (0, HWp - H * W), (0, HWp - H * W)))
    return m.reshape(2 * HWp, HWp).astype(dtype)


def _vmem_capacity_bytes():
    """Generation-aware VMEM capacity; conservative (v7x) fallback."""
    try:
        info = pltpu.get_tpu_info()
        cap = getattr(info, "vmem_capacity_bytes", None)
        if cap:
            return int(cap)
    except Exception:
        pass
    return 64 << 20


def _sublane_multiple(dtype):
    # 8 for f32, 16 for bf16/f16, 32 for int8/fp8.
    return max(8, 32 // jnp.dtype(dtype).itemsize)


def _pick_channel_tile(C, bytes_per_channel, sub, budget):
    """Largest channel tile fitting `budget` (single buffer). Whole C if it
    fits; otherwise a multiple of the dtype-aware sublane count (cdiv tiling,
    last tile masked in-kernel)."""
    if C * bytes_per_channel <= budget:
        return C
    ct = (budget // max(bytes_per_channel, 1)) // sub * sub
    ct = max(sub, ct)
    return min(ct, pl.cdiv(C, sub) * sub)


def spatial_attention(x, weight):
    """x: (N, C, H, W) float, weight: (2, 7, 7). Returns (N, 1, H, W)."""
    N, C, H, W = x.shape
    HW = H * W
    HWp = pl.cdiv(HW, LANES) * LANES
    dtype = x.dtype
    itemsize = jnp.dtype(dtype).itemsize

    vmem_cap = _vmem_capacity_bytes()
    input_tile_budget = max(1 << 20, vmem_cap // 16)   # per single input buffer

    # --- batch blocking ---------------------------------------------------
    if N <= MAX_NB:
        NB, N_pad = N, N                      # small batch: one batch block
    else:
        NB = MAX_NB                           # multiple of 8/16/32 sublanes
        N_pad = pl.cdiv(N, NB) * NB

    # --- channel tiling ---------------------------------------------------
    sub = _sublane_multiple(dtype)
    bytes_per_channel = NB * HWp * itemsize
    CT = _pick_channel_tile(C, bytes_per_channel, sub, input_tile_budget)
    C_pad = pl.cdiv(C, CT) * CT
    mask_channels = (C_pad != C)

    # Lane-dense flattening + zero padding (batch / channel / spatial).
    xf = x.reshape(N, C, HW)
    pads = ((0, N_pad - N), (0, C_pad - C), (0, HWp - HW))
    if any(p for _, p in pads):
        xf = jnp.pad(xf, pads)

    # Fused bf16 conv matrix (halves HBM DMA & VMEM vs f32 pair of matrices).
    conv_m = _build_conv_matrix(weight, H, W, HWp, 1.0 / C, jnp.bfloat16)

    # --- VMEM budget: computed need + headroom, no artificial floor --------
    need = (2 * NB * CT * HWp * itemsize      # x tile, double-buffered
            + 2 * HWp * HWp * 2               # conv matrix, single-buffered bf16
            + 2 * NB * HWp * itemsize         # output tile, double-buffered
            + NB * 2 * HWp * 4                # f32 accumulator scratch
            + (4 << 20))                      # headroom (tile padding, spills)
    vmem_limit = int(min(need, (vmem_cap * 3) // 4))

    kernel = functools.partial(
        _spatial_attention_kernel,
        hwp=HWp, c_total=C, c_tile=CT, mask_channels=mask_channels)

    out_flat = pl.pallas_call(
        kernel,
        out_shape=jax.ShapeDtypeStruct((N_pad, HWp), dtype),
        grid_spec=pltpu.PrefetchScalarGridSpec(
            num_scalar_prefetch=0,
            grid=(N_pad // NB, C_pad // CT),
            in_specs=[
                pl.BlockSpec((NB, CT, HWp), lambda n, c: (n, c, 0)),
                # Constant index_map -> fetched once; single-buffer it.
                pl.BlockSpec((2 * HWp, HWp), lambda n, c: (0, 0),
                             pipeline_mode=pl.Buffered(1)),
            ],
            out_specs=pl.BlockSpec((NB, HWp), lambda n, c: (n, 0)),
            scratch_shapes=[
                pltpu.VMEM((NB, 2 * HWp), jnp.float32),   # [sum | running max]
            ],
        ),
        compiler_params=pltpu.CompilerParams(
            dimension_semantics=("parallel", "arbitrary"),
            vmem_limit_bytes=vmem_limit,
        ),
    )(xf, conv_m)

    return out_flat[:N, :HW].reshape(N, 1, H, W)


def _reference(x, weight):
    # Pure-JAX reference for validation (NCHW conv, same semantics).
    avg_out = jnp.mean(x, axis=1, keepdims=True)
    max_out = jnp.max(x, axis=1, keepdims=True)
    feat = jnp.concatenate([avg_out, max_out], axis=1)        # (N,2,H,W)
    w4 = weight[None]                                          # (1,2,7,7)
    y = lax.conv_general_dilated(
        feat, w4, window_strides=(1, 1), padding=((PAD, PAD), (PAD, PAD)),
        dimension_numbers=("NCHW", "OIHW", "NCHW"),
        precision=lax.Precision.HIGHEST)
    return jax.nn.sigmoid(y)


if __name__ == "__main__":
    key = jax.random.PRNGKey(0)
    kx, kw = jax.random.split(key)

    N, C, H, W = 2, 4, 16, 16
    x = jax.random.normal(kx, (N, C, H, W), dtype=jnp.float32)

    # Deterministic Conv2d(2, 1, 7, bias=False) weight init
    # (kaiming-uniform-like: U(-1/sqrt(fan_in), 1/sqrt(fan_in)), fan_in = 2*7*7).
    fan_in = 2 * KSIZE * KSIZE
    bound = 1.0 / (fan_in ** 0.5)
    weight = jax.random.uniform(
        kw, (2, KSIZE, KSIZE), dtype=jnp.float32, minval=-bound, maxval=bound)

    out = spatial_attention(x, weight)
    out = jax.block_until_ready(out)

    ref = _reference(x, weight)
    assert out.shape == (N, 1, H, W)
    # bf16 single-pass MXU epilogue (per review: no HIGHEST precision) -> a few
    # e-4 of error vs the f32 HIGHEST reference; 5e-3 tolerance has ample margin.
    err = float(jnp.max(jnp.abs(out - ref)))
    assert err < 5e-3, err

    print("KERNEL_OK")
</pallas_src>

<mosaic_0001>
module attributes {stable_mosaic.version = 11 : i64} {
  func.func @_spatial_attention_kernel(%arg0: i32, %arg1: i32, %arg2: memref<2x4x256xf32, #tpu.memory_space<vmem>>, %arg3: memref<512x256xbf16, #tpu.memory_space<vmem>>, %arg4: memref<2x256xf32, #tpu.memory_space<vmem>>, %arg5: memref<2x512xf32, #tpu.memory_space<vmem>>) attributes {dimension_semantics = [#tpu.dimension_semantics<parallel>, #tpu.dimension_semantics<arbitrary>], iteration_bounds = array<i64: 1, 1>, scalar_prefetch = 0 : i64, scratch_operands = 1 : i64, tpu.core_type = #tpu.core_type<tc>, window_params = [{transform_indices = @transform_0, window_bounds = array<i64: 2, 4, 256>}, {pipeline_mode = #tpu.pipeline_mode<synchronous>, transform_indices = @transform_1, window_bounds = array<i64: 512, 256>}, {transform_indices = @transform_2, window_bounds = array<i64: 2, 256>}]} {
    %c0_i32 = arith.constant 0 : i32
    %0 = arith.cmpi eq, %arg1, %c0_i32 : i32
    %1 = arith.extui %0 : i1 to i32
    %c0_i32_0 = arith.constant 0 : i32
    %2 = arith.cmpi ne, %1, %c0_i32_0 : i32
    scf.if %2 {
      %cst_13 = arith.constant 0.000000e+00 : f32
      %15 = vector.broadcast %cst_13 : f32 to vector<2x256xf32>
      %c0_14 = arith.constant 0 : index
      %c0_15 = arith.constant 0 : index
      %16 = vector.load %arg5[%c0_14, %c0_15] : memref<2x512xf32, #tpu.memory_space<vmem>>, vector<2x256xf32>
      tpu.vector_store %arg5[%c0_14, %c0_15], %15 {strides = array<i32>} : memref<2x512xf32, #tpu.memory_space<vmem>>, vector<2x256xf32>,
      %cst_16 = arith.constant -3.40282347E+38 : f32
      %17 = vector.broadcast %cst_16 : f32 to vector<2x256xf32>
      %c0_17 = arith.constant 0 : index
      %c256_18 = arith.constant 256 : index
      %18 = vector.load %arg5[%c0_17, %c256_18] : memref<2x512xf32, #tpu.memory_space<vmem>>, vector<2x256xf32>
      tpu.vector_store %arg5[%c0_17, %c256_18], %17 {strides = array<i32>} : memref<2x512xf32, #tpu.memory_space<vmem>>, vector<2x256xf32>,
    } else {
    }
    %c0 = arith.constant 0 : index
    %c0_1 = arith.constant 0 : index
    %c0_2 = arith.constant 0 : index
    %3 = vector.load %arg2[%c0, %c0_1, %c0_2] : memref<2x4x256xf32, #tpu.memory_space<vmem>>, vector<2x4x256xf32>
    %c0_3 = arith.constant 0 : index
    %c0_4 = arith.constant 0 : index
    %4 = vector.load %arg5[%c0_3, %c0_4] : memref<2x512xf32, #tpu.memory_space<vmem>>, vector<2x256xf32>
    %cst = arith.constant dense<0.000000e+00> : vector<2x256xf32>
    %5 = vector.multi_reduction <add>, %3, %cst [1] : vector<2x4x256xf32> to vector<2x256xf32>
    %6 = arith.addf %4, %5 : vector<2x256xf32>
    %c0_5 = arith.constant 0 : index
    %c0_6 = arith.constant 0 : index
    %7 = vector.load %arg5[%c0_5, %c0_6] : memref<2x512xf32, #tpu.memory_space<vmem>>, vector<2x256xf32>
    tpu.vector_store %arg5[%c0_5, %c0_6], %6 {strides = array<i32>} : memref<2x512xf32, #tpu.memory_space<vmem>>, vector<2x256xf32>,
    %c0_7 = arith.constant 0 : index
    %c256 = arith.constant 256 : index
    %8 = vector.load %arg5[%c0_7, %c256] : memref<2x512xf32, #tpu.memory_space<vmem>>, vector<2x256xf32>
    %cst_8 = arith.constant dense<0xFF800000> : vector<2x256xf32>
    %9 = vector.multi_reduction <maximumf>, %3, %cst_8 [1] : vector<2x4x256xf32> to vector<2x256xf32>
    %10 = arith.maximumf %8, %9 : vector<2x256xf32>
    %c0_9 = arith.constant 0 : index
    %c256_10 = arith.constant 256 : index
    %11 = vector.load %arg5[%c0_9, %c256_10] : memref<2x512xf32, #tpu.memory_space<vmem>>, vector<2x256xf32>
    tpu.vector_store %arg5[%c0_9, %c256_10], %10 {strides = array<i32>} : memref<2x512xf32, #tpu.memory_space<vmem>>, vector<2x256xf32>,
    %c0_i32_11 = arith.constant 0 : i32
    %12 = arith.cmpi eq, %arg1, %c0_i32_11 : i32
    %13 = arith.extui %12 : i1 to i32
    %c0_i32_12 = arith.constant 0 : i32
    %14 = arith.cmpi ne, %13, %c0_i32_12 : i32
    scf.if %14 {
      %c0_13 = arith.constant 0 : index
      %c0_14 = arith.constant 0 : index
      %15 = vector.load %arg5[%c0_13, %c0_14] : memref<2x512xf32, #tpu.memory_space<vmem>>, vector<2x512xf32>
      %16 = arith.truncf %15 : vector<2x512xf32> to vector<2x512xbf16>
      %c0_15 = arith.constant 0 : index
      %c0_16 = arith.constant 0 : index
      %17 = vector.load %arg3[%c0_15, %c0_16] : memref<512x256xbf16, #tpu.memory_space<vmem>>, vector<512x256xbf16>
      %cst_17 = arith.constant dense<0.000000e+00> : vector<2x256xf32>
      %18 = tpu.matmul %16, %17, %cst_17 {dimension_numbers = #tpu.dot_dimension_numbers<[1], [0], [0], [1], [0, 0, 1, 1], [], []>} : vector<2x512xbf16>, vector<512x256xbf16>, vector<2x256xf32> -> vector<2x256xf32>
      %19 = arith.negf %18 : vector<2x256xf32>
      %20 = math.exp %19 : vector<2x256xf32>
      %cst_18 = arith.constant 1.000000e+00 : f32
      %21 = vector.broadcast %cst_18 : f32 to vector<2x256xf32>
      %22 = arith.addf %21, %20 : vector<2x256xf32>
      %23 = arith.divf %21, %22 : vector<2x256xf32>
      %c0_19 = arith.constant 0 : index
      %c0_20 = arith.constant 0 : index
      %24 = vector.load %arg4[%c0_19, %c0_20] : memref<2x256xf32, #tpu.memory_space<vmem>>, vector<2x256xf32>
      tpu.vector_store %arg4[%c0_19, %c0_20], %23 {strides = array<i32>} : memref<2x256xf32, #tpu.memory_space<vmem>>, vector<2x256xf32>,
    } else {
    }
    return
  }
  func.func @transform_0(%arg0: i32, %arg1: i32) -> (i32, i32, i32) {
    %c0_i32 = arith.constant 0 : i32
    %c0_i32_0 = arith.constant 0 : i32
    return %arg0, %arg1, %c0_i32 : i32, i32, i32
  }
  func.func @transform_1(%arg0: i32, %arg1: i32) -> (i32, i32) {
    %c0_i32 = arith.constant 0 : i32
    %c0_i32_0 = arith.constant 0 : i32
    %c0_i32_1 = arith.constant 0 : i32
    return %c0_i32, %c0_i32_0 : i32, i32
  }
  func.func @transform_2(%arg0: i32, %arg1: i32) -> (i32, i32) {
    %c0_i32 = arith.constant 0 : i32
    %c0_i32_0 = arith.constant 0 : i32
    return %arg0, %c0_i32 : i32, i32
  }
}

</mosaic_0001>

<llo_original>
// kernel: tpu_custom_call.1
$region0: #{tpu_custom_call.1}
  #allocation0 [shape = 'u32[]', space=smem, size = 0x4, offset = 0x4, fixed_abs, tag = 'smem constant byte address 0x4 - core index']
  #allocation1 [shape = 'u32[72,128]{1,0:T(1,128)}', space=vmem, size = 0x9000, scoped, tag = 'internal scratch']
  #allocation2 [shape = 'f32[2,512]{1,0:T(2,128)}', space=vmem, size = 0x1000, scoped, tag = 'scratch operand']
  %s0 = inlined_call_operand.hbm [shape: f32[2,4,256], index: 0, kind: input, shape index: {}]
  %s1 = inlined_call_operand.hbm [shape: bf16[512,256], index: 1, kind: input, shape index: {}]
  %s2 = inlined_call_operand.hbm [shape: f32[2,256], index: 2, kind: output, shape index: {}]
  %s3 = sld [smem:[#allocation0]]
  $region34: #{tpu_custom_call.1} parent=0
    _
  %s5 = ssub.s32 1, %s3
  %s6 = scalar_select 0, %s5, %s3
  $region1: #{tpu_custom_call.1} parent=0
    #allocation3 [shape = 'u8[8192]{0}', space=vmem, size = 0x2000, scoped, tag = 'input window, operand 0, single buffered']
    #allocation4 [shape = 's32[1]{0}', space=sflag, size = 0x4, scoped, tag = 'scoped memory for tpu_custom_call.1']
    #allocation5 [shape = 's32[1]{0}', space=sflag, size = 0x4, scoped, tag = 'scoped memory for tpu_custom_call.1']
    #allocation6 [shape = 'u8[262144]{0}', space=vmem, size = 0x40000, scoped, tag = 'input window, operand 1, single buffered']
    #allocation7 [shape = 's32[1]{0}', space=sflag, size = 0x4, scoped, tag = 'scoped memory for tpu_custom_call.1']
    #allocation8 [shape = 'u8[2048]{0}', space=vmem, size = 0x800, scoped, tag = 'output window, operand 0, single buffered']
    %7 = vsyncpa [#allocation4], 0
    %8 = vsyncpa [#allocation7], 0
    %9 = vsyncpa [#allocation5], 0
    // Predicated region
    $region2: #{tpu_custom_call.1} parent=1 // pred_check
      _
    $region3: #{tpu_custom_call.1} parent=1 // pred_check_branch
      %11 = sbr.rel (0) target = $region5
    $region4: #{tpu_custom_call.1} parent=1 // pred_region
      %13 = vsyncadd [#allocation4], 0
      %s14 = sshll.u32 %s0, 4
      %s15 = int_to_ptr.hbm [resolvable:$true] %s14
      %s16 = sshll.u32 [#allocation3], 4
      %s17 = int_to_ptr.vmem [resolvable:$true] %s16
      %22 = dma.hbm_to_vmem [thread:$0]  %s15, 256, %s17, [#allocation4], 128, 128, 8
    $region5: #{tpu_custom_call.1} parent=1 // pred_fallthru
      _
    // Predicated region
    $region6: #{tpu_custom_call.1} parent=1 // pred_check
      _
    $region7: #{tpu_custom_call.1} parent=1 // pred_check_branch
      %24 = sbr.rel (0) target = $region9
    $region8: #{tpu_custom_call.1} parent=1 // pred_region
      %26 = vsyncadd [#allocation7], 0
      %s27 = sshll.u32 %s1, 4
      %s28 = int_to_ptr.hbm [resolvable:$true] %s27
      %s29 = sshll.u32 [#allocation6], 4
      %s30 = int_to_ptr.vmem [resolvable:$true] %s29
      %35 = dma.hbm_to_vmem [thread:$0]  %s28, 8192, %s30, [#allocation7], 128, 128, 8
    $region9: #{tpu_custom_call.1} parent=1 // pred_fallthru
      _
    // Predicated region
    $region10: #{tpu_custom_call.1} parent=1 // pred_check
      _
    $region11: #{tpu_custom_call.1} parent=1 // pred_check_branch
      %37 = sbr.rel (0) target = $region13
    $region12: #{tpu_custom_call.1} parent=1 // pred_region
      %39 = dma.done [#allocation4], 256
    $region13: #{tpu_custom_call.1} parent=1 // pred_fallthru
      _
    // Predicated region
    $region14: #{tpu_custom_call.1} parent=1 // pred_check
      _
    $region15: #{tpu_custom_call.1} parent=1 // pred_check_branch
      %41 = sbr.rel (0) target = $region17
    $region16: #{tpu_custom_call.1} parent=1 // pred_region
      %43 = dma.done [#allocation7], 8192
    $region17: #{tpu_custom_call.1} parent=1 // pred_fallthru
      _
    %p44 = scmp.eq.s32.totalorder 0, 0
    // Predicated region
    $region18: #{tpu_custom_call.1} parent=1 // pred_check
      %p45 = pneg %p44
    $region19: #{tpu_custom_call.1} parent=1 // pred_check_branch
      %47 = sbr.rel (%p45) target = $region21
    $region20: #{tpu_custom_call.1} parent=1 // pred_region
      %48 = vst [vmem:[#allocation2] sm:$0xf] 0.0
      %49 = vst [vmem:[#allocation2 + $0x4] sm:$0xf] -3.4028235e+38
    $region21: #{tpu_custom_call.1} parent=1 // pred_fallthru
      _
    %v50 = vld [vmem:[#allocation3] sm:$0xff]
    %v51 = vld [vmem:[#allocation3 + $0x8] sm:$0xff]
    %v52 = vld [vmem:[#allocation2] sm:$0xf]
    %55 = vst [vmem:[#allocation1] ss:$2 sm:$0xff] %v50
    %v56 = vld.sshfl [vmem:[#allocation1] sm:$0xff pattern:$0x75316420]
    %v57 = vld.sshfl [vmem:[#allocation1 + $0x8] sm:$0xff pattern:$0x75316420]
    %s58 = scalar_lea.vmem [#allocation1], 16
    %59 = vst [vmem:[%s58] ss:$2 sm:$0xff] %v51
    %v60 = vld.sshfl [vmem:[#allocation1 + $0x10] sm:$0xff pattern:$0x75316420]
    %v61 = vld.sshfl [vmem:[#allocation1 + $0x18] sm:$0xff pattern:$0x75316420]
    %vm66 = vcmask 1043456
    %v67 = vsel %vm66, %v56, 0.0
    %v68 = vrot.slane %v67, 4
    %v69 = vadd.f32 %v67, %v68
    %v70 = vrot.slane %v69, 2
    %v71 = vadd.f32 %v69, %v70
    %v72 = vrot.slane %v71, 1
    %v73 = vadd.f32 %v71, %v72
    %v74 = vsel %vm66, %v57, 0.0
    %v75 = vrot.slane %v74, 4
    %v76 = vadd.f32 %v74, %v75
    %v77 = vrot.slane %v76, 2
    %v78 = vadd.f32 %v76, %v77
    %v79 = vrot.slane %v78, 1
    %v80 = vadd.f32 %v78, %v79
    %v81 = vsel %vm66, %v60, 0.0
    %v82 = vrot.slane %v81, 4
    %v83 = vadd.f32 %v81, %v82
    %v84 = vrot.slane %v83, 2
    %v85 = vadd.f32 %v83, %v84
    %v86 = vrot.slane %v85, 1
    %v87 = vadd.f32 %v85, %v86
    %v88 = vsel %vm66, %v61, 0.0
    %v89 = vrot.slane %v88, 4
    %v90 = vadd.f32 %v88, %v89
    %v91 = vrot.slane %v90, 2
    %v92 = vadd.f32 %v90, %v91
    %v93 = vrot.slane %v92, 1
    %v94 = vadd.f32 %v92, %v93
    %v99 = vrot.slane %v80, 6
    %v100 = vrot.slane %v94, 6
    %vm101 = vcmask 1041408
    %v102 = vsel %vm101, %v73, %v99
    %v103 = vsel %vm101, %v87, %v100
    %vm104 = vcmask 1044484
    %v105 = vsel %vm104, %v102, %v102
    %vm106 = vcmask 1046534
    %v107 = vsel %vm106, %v102, %v105
    %v108 = vrot.slane %v103, 7
    %vm109 = vcmask 1041409
    %v110 = vsel %vm109, %v108, %v107
    %vm111 = vcmask 1043459
    %v112 = vsel %vm111, %v108, %v110
    %vm113 = vcmask 1045509
    %v114 = vsel %vm113, %v108, %v112
    %vm115 = vcmask 1047559
    %v116 = vsel %vm115, %v108, %v114
    %v118 = vadd.f32 %v52, %v116
    %119 = vst [vmem:[#allocation2] sm:$0xf] %v118
    %v120 = vld [vmem:[#allocation2 + $0x4] sm:$0xf]
    %121 = vst [vmem:[#allocation1] ss:$2 sm:$0xff] %v50
    %v122 = vld.sshfl [vmem:[#allocation1] sm:$0xff pattern:$0x75316420]
    %v123 = vld.sshfl [vmem:[#allocation1 + $0x8] sm:$0xff pattern:$0x75316420]
    %s124 = scalar_lea.vmem [#allocation1], 16
    %125 = vst [vmem:[%s124] ss:$2 sm:$0xff] %v51
    %v126 = vld.sshfl [vmem:[#allocation1 + $0x10] sm:$0xff pattern:$0x75316420]
    %v127 = vld.sshfl [vmem:[#allocation1 + $0x18] sm:$0xff pattern:$0x75316420]
    %v132 = vsel %vm66, %v122, -inf
    %v133 = vrot.slane %v132, 4
    %v134 = vmax.f32 %v132, %v133
    %v135 = vrot.slane %v134, 2
    %v136 = vmax.f32 %v134, %v135
    %v137 = vrot.slane %v136, 1
    %v138 = vmax.f32 %v136, %v137
    %v139 = vsel %vm66, %v123, -inf
    %v140 = vrot.slane %v139, 4
    %v141 = vmax.f32 %v139, %v140
    %v142 = vrot.slane %v141, 2
    %v143 = vmax.f32 %v141, %v142
    %v144 = vrot.slane %v143, 1
    %v145 = vmax.f32 %v143, %v144
    %v146 = vsel %vm66, %v126, -inf
    %v147 = vrot.slane %v146, 4
    %v148 = vmax.f32 %v146, %v147
    %v149 = vrot.slane %v148, 2
    %v150 = vmax.f32 %v148, %v149
    %v151 = vrot.slane %v150, 1
    %v152 = vmax.f32 %v150, %v151
    %v153 = vsel %vm66, %v127, -inf
    %v154 = vrot.slane %v153, 4
    %v155 = vmax.f32 %v153, %v154
    %v156 = vrot.slane %v155, 2
    %v157 = vmax.f32 %v155, %v156
    %v158 = vrot.slane %v157, 1
    %v159 = vmax.f32 %v157, %v158
    %v164 = vrot.slane %v145, 6
    %v165 = vrot.slane %v159, 6
    %v166 = vsel %vm101, %v138, %v164
    %v167 = vsel %vm101, %v152, %v165
    %v168 = vsel %vm104, %v166, %v166
    %v169 = vsel %vm106, %v166, %v168
    %v170 = vrot.slane %v167, 7
    %v171 = vsel %vm109, %v170, %v169
    %v172 = vsel %vm111, %v170, %v171
    %v173 = vsel %vm113, %v170, %v172
    %v174 = vsel %vm115, %v170, %v173
    %v176 = vmax.f32 %v120, %v174
    %177 = vst [vmem:[#allocation2 + $0x4] sm:$0xf] %v176
    // Predicated region
    $region22: #{tpu_custom_call.1} parent=1 // pred_check
      %p178 = pneg %p44
    $region23: #{tpu_custom_call.1} parent=1 // pred_check_branch
      %180 = sbr.rel (%p178) target = $region25
    $region24: #{tpu_custom_call.1} parent=1 // pred_region
      %v181 = vld [vmem:[#allocation2] sm:$0xff]
      %183 = vst [vmem:[#allocation1] ss:$4 sm:$0xff] %v181
      %v184 = vld.sshfl [vmem:[#allocation1] sm:$0xff pattern:$0x73625140]
      %v185 = vld.sshfl [vmem:[#allocation1 + $0x8] sm:$0xff pattern:$0x73625140]
      %v186 = vld.sshfl [vmem:[#allocation1 + $0x10] sm:$0xff pattern:$0x73625140]
      %v187 = vld.sshfl [vmem:[#allocation1 + $0x18] sm:$0xff pattern:$0x73625140]
      %v192 = vpack.c.bf16 %v184, %v184
      %v193 = vpack.c.bf16 %v185, %v185
      %v194 = vpack.c.bf16 %v186, %v186
      %v195 = vpack.c.bf16 %v187, %v187
      %v196 = vld [vmem:[#allocation6] sm:$0xff]
      %v197 = vld [vmem:[#allocation6 + $0x8] sm:$0xff]
      %v198 = vld [vmem:[#allocation6 + $0x10] sm:$0xff]
      %v199 = vld [vmem:[#allocation6 + $0x18] sm:$0xff]
      %v200 = vld [vmem:[#allocation6 + $0x20] sm:$0xff]
      %v201 = vld [vmem:[#allocation6 + $0x28] sm:$0xff]
      %v202 = vld [vmem:[#allocation6 + $0x30] sm:$0xff]
      %v203 = vld [vmem:[#allocation6 + $0x38] sm:$0xff]
      %v204 = vld [vmem:[#allocation6 + $0x40] sm:$0xff]
      %v205 = vld [vmem:[#allocation6 + $0x48] sm:$0xff]
      %v206 = vld [vmem:[#allocation6 + $0x50] sm:$0xff]
      %v207 = vld [vmem:[#allocation6 + $0x58] sm:$0xff]
      %v208 = vld [vmem:[#allocation6 + $0x60] sm:$0xff]
      %v209 = vld [vmem:[#allocation6 + $0x68] sm:$0xff]
      %v210 = vld [vmem:[#allocation6 + $0x70] sm:$0xff]
      %v211 = vld [vmem:[#allocation6 + $0x78] sm:$0xff]
      %v212 = vld [vmem:[#allocation6 + $0x80] sm:$0xff]
      %v213 = vld [vmem:[#allocation6 + $0x88] sm:$0xff]
      %v214 = vld [vmem:[#allocation6 + $0x90] sm:$0xff]
      %v215 = vld [vmem:[#allocation6 + $0x98] sm:$0xff]
      %v216 = vld [vmem:[#allocation6 + $0xa0] sm:$0xff]
      %v217 = vld [vmem:[#allocation6 + $0xa8] sm:$0xff]
      %v218 = vld [vmem:[#allocation6 + $0xb0] sm:$0xff]
      %v219 = vld [vmem:[#allocation6 + $0xb8] sm:$0xff]
      %v220 = vld [vmem:[#allocation6 + $0xc0] sm:$0xff]
      %v221 = vld [vmem:[#allocation6 + $0xc8] sm:$0xff]
      %v222 = vld [vmem:[#allocation6 + $0xd0] sm:$0xff]
      %v223 = vld [vmem:[#allocation6 + $0xd8] sm:$0xff]
      %v224 = vld [vmem:[#allocation6 + $0xe0] sm:$0xff]
      %v225 = vld [vmem:[#allocation6 + $0xe8] sm:$0xff]
      %v226 = vld [vmem:[#allocation6 + $0xf0] sm:$0xff]
      %v227 = vld [vmem:[#allocation6 + $0xf8] sm:$0xff]
      %v228 = vld [vmem:[#allocation6 + $0x100] sm:$0xff]
      %v229 = vld [vmem:[#allocation6 + $0x108] sm:$0xff]
      %v230 = vld [vmem:[#allocation6 + $0x110] sm:$0xff]
      %v231 = vld [vmem:[#allocation6 + $0x118] sm:$0xff]
      %v232 = vld [vmem:[#allocation6 + $0x120] sm:$0xff]
      %v233 = vld [vmem:[#allocation6 + $0x128] sm:$0xff]
      %v234 = vld [vmem:[#allocation6 + $0x130] sm:$0xff]
      %v235 = vld [vmem:[#allocation6 + $0x138] sm:$0xff]
      %v236 = vld [vmem:[#allocation6 + $0x140] sm:$0xff]
      %v237 = vld [vmem:[#allocation6 + $0x148] sm:$0xff]
      %v238 = vld [vmem:[#allocation6 + $0x150] sm:$0xff]
      %v239 = vld [vmem:[#allocation6 + $0x158] sm:$0xff]
      %v240 = vld [vmem:[#allocation6 + $0x160] sm:$0xff]
      %v241 = vld [vmem:[#allocation6 + $0x168] sm:$0xff]
      %v242 = vld [vmem:[#allocation6 + $0x170] sm:$0xff]
      %v243 = vld [vmem:[#allocation6 + $0x178] sm:$0xff]
      %v244 = vld [vmem:[#allocation6 + $0x180] sm:$0xff]
      %v245 = vld [vmem:[#allocation6 + $0x188] sm:$0xff]
      %v246 = vld [vmem:[#allocation6 + $0x190] sm:$0xff]
      %v247 = vld [vmem:[#allocation6 + $0x198] sm:$0xff]
      %v248 = vld [vmem:[#allocation6 + $0x1a0] sm:$0xff]
      %v249 = vld [vmem:[#allocation6 + $0x1a8] sm:$0xff]
      %v250 = vld [vmem:[#allocation6 + $0x1b0] sm:$0xff]
      %v251 = vld [vmem:[#allocation6 + $0x1b8] sm:$0xff]
      %v252 = vld [vmem:[#allocation6 + $0x1c0] sm:$0xff]
      %v253 = vld [vmem:[#allocation6 + $0x1c8] sm:$0xff]
      %v254 = vld [vmem:[#allocation6 + $0x1d0] sm:$0xff]
      %v255 = vld [vmem:[#allocation6 + $0x1d8] sm:$0xff]
      %v256 = vld [vmem:[#allocation6 + $0x1e0] sm:$0xff]
      %v257 = vld [vmem:[#allocation6 + $0x1e8] sm:$0xff]
      %v258 = vld [vmem:[#allocation6 + $0x1f0] sm:$0xff]
      %v259 = vld [vmem:[#allocation6 + $0x1f8] sm:$0xff]
      %v324 = vunpack.c.l.b16 %v196
      %v325 = vunpack.c.h.b16 %v196
      %v326 = vunpack.c.l.b16 %v197
      %v327 = vunpack.c.h.b16 %v197
      %v328 = vunpack.c.l.b16 %v198
      %v329 = vunpack.c.h.b16 %v198
      %v330 = vunpack.c.l.b16 %v199
      %v331 = vunpack.c.h.b16 %v199
      %v332 = vunpack.c.l.b16 %v200
      %v333 = vunpack.c.h.b16 %v200
      %v334 = vunpack.c.l.b16 %v201
      %v335 = vunpack.c.h.b16 %v201
      %v336 = vunpack.c.l.b16 %v202
      %v337 = vunpack.c.h.b16 %v202
      %v338 = vunpack.c.l.b16 %v203
      %v339 = vunpack.c.h.b16 %v203
      %v340 = vunpack.c.l.b16 %v204
      %v341 = vunpack.c.h.b16 %v204
      %v342 = vunpack.c.l.b16 %v205
      %v343 = vunpack.c.h.b16 %v205
      %v344 = vunpack.c.l.b16 %v206
      %v345 = vunpack.c.h.b16 %v206
      %v346 = vunpack.c.l.b16 %v207
      %v347 = vunpack.c.h.b16 %v207
      %v348 = vunpack.c.l.b16 %v208
      %v349 = vunpack.c.h.b16 %v208
      %v350 = vunpack.c.l.b16 %v209
      %v351 = vunpack.c.h.b16 %v209
      %v352 = vunpack.c.l.b16 %v210
      %v353 = vunpack.c.h.b16 %v210
      %v354 = vunpack.c.l.b16 %v211
      %v355 = vunpack.c.h.b16 %v211
      %v356 = vunpack.c.l.b16 %v212
      %v357 = vunpack.c.h.b16 %v212
      %v358 = vunpack.c.l.b16 %v213
      %v359 = vunpack.c.h.b16 %v213
      %v360 = vunpack.c.l.b16 %v214
      %v361 = vunpack.c.h.b16 %v214
      %v362 = vunpack.c.l.b16 %v215
      %v363 = vunpack.c.h.b16 %v215
      %v364 = vunpack.c.l.b16 %v216
      %v365 = vunpack.c.h.b16 %v216
      %v366 = vunpack.c.l.b16 %v217
      %v367 = vunpack.c.h.b16 %v217
      %v368 = vunpack.c.l.b16 %v218
      %v369 = vunpack.c.h.b16 %v218
      %v370 = vunpack.c.l.b16 %v219
      %v371 = vunpack.c.h.b16 %v219
      %v372 = vunpack.c.l.b16 %v220
      %v373 = vunpack.c.h.b16 %v220
      %v374 = vunpack.c.l.b16 %v221
      %v375 = vunpack.c.h.b16 %v221
      %v376 = vunpack.c.l.b16 %v222
      %v377 = vunpack.c.h.b16 %v222
      %v378 = vunpack.c.l.b16 %v223
      %v379 = vunpack.c.h.b16 %v223
      %v380 = vunpack.c.l.b16 %v224
      %v381 = vunpack.c.h.b16 %v224
      %v382 = vunpack.c.l.b16 %v225
      %v383 = vunpack.c.h.b16 %v225
      %v384 = vunpack.c.l.b16 %v226
      %v385 = vunpack.c.h.b16 %v226
      %v386 = vunpack.c.l.b16 %v227
      %v387 = vunpack.c.h.b16 %v227
      %v388 = vunpack.c.l.b16 %v228
      %v389 = vunpack.c.h.b16 %v228
      %v390 = vunpack.c.l.b16 %v229
      %v391 = vunpack.c.h.b16 %v229
      %v392 = vunpack.c.l.b16 %v230
      %v393 = vunpack.c.h.b16 %v230
      %v394 = vunpack.c.l.b16 %v231
      %v395 = vunpack.c.h.b16 %v231
      %v396 = vunpack.c.l.b16 %v232
      %v397 = vunpack.c.h.b16 %v232
      %v398 = vunpack.c.l.b16 %v233
      %v399 = vunpack.c.h.b16 %v233
      %v400 = vunpack.c.l.b16 %v234
      %v401 = vunpack.c.h.b16 %v234
      %v402 = vunpack.c.l.b16 %v235
      %v403 = vunpack.c.h.b16 %v235
      %v404 = vunpack.c.l.b16 %v236
      %v405 = vunpack.c.h.b16 %v236
      %v406 = vunpack.c.l.b16 %v237
      %v407 = vunpack.c.h.b16 %v237
      %v408 = vunpack.c.l.b16 %v238
      %v409 = vunpack.c.h.b16 %v238
      %v410 = vunpack.c.l.b16 %v239
      %v411 = vunpack.c.h.b16 %v239
      %v412 = vunpack.c.l.b16 %v240
      %v413 = vunpack.c.h.b16 %v240
      %v414 = vunpack.c.l.b16 %v241
      %v415 = vunpack.c.h.b16 %v241
      %v416 = vunpack.c.l.b16 %v242
      %v417 = vunpack.c.h.b16 %v242
      %v418 = vunpack.c.l.b16 %v243
      %v419 = vunpack.c.h.b16 %v243
      %v420 = vunpack.c.l.b16 %v244
      %v421 = vunpack.c.h.b16 %v244
      %v422 = vunpack.c.l.b16 %v245
      %v423 = vunpack.c.h.b16 %v245
      %v424 = vunpack.c.l.b16 %v246
      %v425 = vunpack.c.h.b16 %v246
      %v426 = vunpack.c.l.b16 %v247
      %v427 = vunpack.c.h.b16 %v247
      %v428 = vunpack.c.l.b16 %v248
      %v429 = vunpack.c.h.b16 %v248
      %v430 = vunpack.c.l.b16 %v249
      %v431 = vunpack.c.h.b16 %v249
      %v432 = vunpack.c.l.b16 %v250
      %v433 = vunpack.c.h.b16 %v250
      %v434 = vunpack.c.l.b16 %v251
      %v435 = vunpack.c.h.b16 %v251
      %v436 = vunpack.c.l.b16 %v252
      %v437 = vunpack.c.h.b16 %v252
      %v438 = vunpack.c.l.b16 %v253
      %v439 = vunpack.c.h.b16 %v253
      %v440 = vunpack.c.l.b16 %v254
      %v441 = vunpack.c.h.b16 %v254
      %v442 = vunpack.c.l.b16 %v255
      %v443 = vunpack.c.h.b16 %v255
      %v444 = vunpack.c.l.b16 %v256
      %v445 = vunpack.c.h.b16 %v256
      %v446 = vunpack.c.l.b16 %v257
      %v447 = vunpack.c.h.b16 %v257
      %v448 = vunpack.c.l.b16 %v258
      %v449 = vunpack.c.h.b16 %v258
      %v450 = vunpack.c.l.b16 %v259
      %v451 = vunpack.c.h.b16 %v259
      %v452 = vpack.c.b16 %v326, %v324
      %v453 = vpack.c.b16 %v327, %v325
      %v454 = vpack.c.b16 %v330, %v328
      %v455 = vpack.c.b16 %v331, %v329
      %v456 = vpack.c.b16 %v334, %v332
      %v457 = vpack.c.b16 %v335, %v333
      %v458 = vpack.c.b16 %v338, %v336
      %v459 = vpack.c.b16 %v339, %v337
      %v460 = vpack.c.b16 %v342, %v340
      %v461 = vpack.c.b16 %v343, %v341
      %v462 = vpack.c.b16 %v346, %v344
      %v463 = vpack.c.b16 %v347, %v345
      %v464 = vpack.c.b16 %v350, %v348
      %v465 = vpack.c.b16 %v351, %v349
      %v466 = vpack.c.b16 %v354, %v352
      %v467 = vpack.c.b16 %v355, %v353
      %v468 = vpack.c.b16 %v358, %v356
      %v469 = vpack.c.b16 %v359, %v357
      %v470 = vpack.c.b16 %v362, %v360
      %v471 = vpack.c.b16 %v363, %v361
      %v472 = vpack.c.b16 %v366, %v364
      %v473 = vpack.c.b16 %v367, %v365
      %v474 = vpack.c.b16 %v370, %v368
      %v475 = vpack.c.b16 %v371, %v369
      %v476 = vpack.c.b16 %v374, %v372
      %v477 = vpack.c.b16 %v375, %v373
      %v478 = vpack.c.b16 %v378, %v376
      %v479 = vpack.c.b16 %v379, %v377
      %v480 = vpack.c.b16 %v382, %v380
      %v481 = vpack.c.b16 %v383, %v381
      %v482 = vpack.c.b16 %v386, %v384
      %v483 = vpack.c.b16 %v387, %v385
      %v484 = vpack.c.b16 %v390, %v388
      %v485 = vpack.c.b16 %v391, %v389
      %v486 = vpack.c.b16 %v394, %v392
      %v487 = vpack.c.b16 %v395, %v393
      %v488 = vpack.c.b16 %v398, %v396
      %v489 = vpack.c.b16 %v399, %v397
      %v490 = vpack.c.b16 %v402, %v400
      %v491 = vpack.c.b16 %v403, %v401
      %v492 = vpack.c.b16 %v406, %v404
      %v493 = vpack.c.b16 %v407, %v405
      %v494 = vpack.c.b16 %v410, %v408
      %v495 = vpack.c.b16 %v411, %v409
      %v496 = vpack.c.b16 %v414, %v412
      %v497 = vpack.c.b16 %v415, %v413
      %v498 = vpack.c.b16 %v418, %v416
      %v499 = vpack.c.b16 %v419, %v417
      %v500 = vpack.c.b16 %v422, %v420
      %v501 = vpack.c.b16 %v423, %v421
      %v502 = vpack.c.b16 %v426, %v424
      %v503 = vpack.c.b16 %v427, %v425
      %v504 = vpack.c.b16 %v430, %v428
      %v505 = vpack.c.b16 %v431, %v429
      %v506 = vpack.c.b16 %v434, %v432
      %v507 = vpack.c.b16 %v435, %v433
      %v508 = vpack.c.b16 %v438, %v436
      %v509 = vpack.c.b16 %v439, %v437
      %v510 = vpack.c.b16 %v442, %v440
      %v511 = vpack.c.b16 %v443, %v441
      %v512 = vpack.c.b16 %v446, %v444
      %v513 = vpack.c.b16 %v447, %v445
      %v514 = vpack.c.b16 %v450, %v448
      %v515 = vpack.c.b16 %v451, %v449
      %580 = vmatpush.bf16.msra.mxu0 %v466
      %581 = vmatpush.bf16.msra.mxu0 %v464
      %582 = vmatpush.bf16.msra.mxu0 %v462
      %583 = vmatpush.bf16.msra.mxu0 %v460
      %584 = vmatpush.bf16.msra.mxu0 %v458
      %585 = vmatpush.bf16.msra.mxu0 %v456
      %586 = vmatpush.bf16.msra.mxu0 %v454
      %587 = vmatpush.bf16.msra.mxu0 %v452
      %588 = vmatmul.bf16.gmra.mxu0 %v192
      %v589 = vpop.f32.mrf.mxu0
      %v590 = vadd.f32 0.0, %v589
      %v591 = vpop.f32.mrf.mxu0
      %592 = vdwg.mxu0
      %593 = vmatpush.bf16.msra.mxu0 %v482
      %594 = vmatpush.bf16.msra.mxu0 %v480
      %595 = vmatpush.bf16.msra.mxu0 %v478
      %596 = vmatpush.bf16.msra.mxu0 %v476
      %597 = vmatpush.bf16.msra.mxu0 %v474
      %598 = vmatpush.bf16.msra.mxu0 %v472
      %599 = vmatpush.bf16.msra.mxu0 %v470
      %600 = vmatpush.bf16.msra.mxu0 %v468
      %601 = vmatmul.bf16.gmra.mxu0 %v193
      %v602 = vpop.f32.mrf.mxu0
      %v603 = vadd.f32 %v590, %v602
      %v604 = vpop.f32.mrf.mxu0
      %605 = vdwg.mxu0
      %606 = vmatpush.bf16.msra.mxu0 %v498
      %607 = vmatpush.bf16.msra.mxu0 %v496
      %608 = vmatpush.bf16.msra.mxu0 %v494
      %609 = vmatpush.bf16.msra.mxu0 %v492
      %610 = vmatpush.bf16.msra.mxu0 %v490
      %611 = vmatpush.bf16.msra.mxu0 %v488
      %612 = vmatpush.bf16.msra.mxu0 %v486
      %613 = vmatpush.bf16.msra.mxu0 %v484
      %614 = vmatmul.bf16.gmra.mxu0 %v194
      %v615 = vpop.f32.mrf.mxu0
      %v616 = vadd.f32 %v603, %v615
      %v617 = vpop.f32.mrf.mxu0
      %618 = vdwg.mxu0
      %619 = vmatpush.bf16.msra.mxu0 %v514
      %620 = vmatpush.bf16.msra.mxu0 %v512
      %621 = vmatpush.bf16.msra.mxu0 %v510
      %622 = vmatpush.bf16.msra.mxu0 %v508
      %623 = vmatpush.bf16.msra.mxu0 %v506
      %624 = vmatpush.bf16.msra.mxu0 %v504
      %625 = vmatpush.bf16.msra.mxu0 %v502
      %626 = vmatpush.bf16.msra.mxu0 %v500
      %627 = vmatmul.bf16.gmra.mxu0 %v195
      %v628 = vpop.f32.mrf.mxu0
      %v629 = vadd.f32 %v616, %v628
      %v630 = vpop.f32.mrf.mxu0
      %631 = vdwg.mxu0
      %632 = vmatpush.bf16.msra.mxu0 %v467
      %633 = vmatpush.bf16.msra.mxu0 %v465
      %634 = vmatpush.bf16.msra.mxu0 %v463
      %635 = vmatpush.bf16.msra.mxu0 %v461
      %636 = vmatpush.bf16.msra.mxu0 %v459
      %637 = vmatpush.bf16.msra.mxu0 %v457
      %638 = vmatpush.bf16.msra.mxu0 %v455
      %639 = vmatpush.bf16.msra.mxu0 %v453
      %640 = vmatmul.bf16.gmra.mxu0 %v192
      %v641 = vpop.f32.mrf.mxu0
      %v642 = vadd.f32 0.0, %v641
      %v643 = vpop.f32.mrf.mxu0
      %644 = vdwg.mxu0
      %645 = vmatpush.bf16.msra.mxu0 %v483
      %646 = vmatpush.bf16.msra.mxu0 %v481
      %647 = vmatpush.bf16.msra.mxu0 %v479
      %648 = vmatpush.bf16.msra.mxu0 %v477
      %649 = vmatpush.bf16.msra.mxu0 %v475
      %650 = vmatpush.bf16.msra.mxu0 %v473
      %651 = vmatpush.bf16.msra.mxu0 %v471
      %652 = vmatpush.bf16.msra.mxu0 %v469
      %653 = vmatmul.bf16.gmra.mxu0 %v193
      %v654 = vpop.f32.mrf.mxu0
      %v655 = vadd.f32 %v642, %v654
      %v656 = vpop.f32.mrf.mxu0
      %657 = vdwg.mxu0
      %658 = vmatpush.bf16.msra.mxu0 %v499
      %659 = vmatpush.bf16.msra.mxu0 %v497
      %660 = vmatpush.bf16.msra.mxu0 %v495
      %661 = vmatpush.bf16.msra.mxu0 %v493
      %662 = vmatpush.bf16.msra.mxu0 %v491
      %663 = vmatpush.bf16.msra.mxu0 %v489
      %664 = vmatpush.bf16.msra.mxu0 %v487
      %665 = vmatpush.bf16.msra.mxu0 %v485
      %666 = vmatmul.bf16.gmra.mxu0 %v194
      %v667 = vpop.f32.mrf.mxu0
      %v668 = vadd.f32 %v655, %v667
      %v669 = vpop.f32.mrf.mxu0
      %670 = vdwg.mxu0
      %671 = vmatpush.bf16.msra.mxu0 %v515
      %672 = vmatpush.bf16.msra.mxu0 %v513
      %673 = vmatpush.bf16.msra.mxu0 %v511
      %674 = vmatpush.bf16.msra.mxu0 %v509
      %675 = vmatpush.bf16.msra.mxu0 %v507
      %676 = vmatpush.bf16.msra.mxu0 %v505
      %677 = vmatpush.bf16.msra.mxu0 %v503
      %678 = vmatpush.bf16.msra.mxu0 %v501
      %679 = vmatmul.bf16.gmra.mxu0 %v195
      %v680 = vpop.f32.mrf.mxu0
      %v681 = vadd.f32 %v668, %v680
      %v682 = vpop.f32.mrf.mxu0
      %683 = vdwg.mxu0
      %v684 = vxor.u32 %v629, 2147483648
      %v685 = vxor.u32 %v681, 2147483648
      %v686 = vmul.f32 %v684, 1.442695
      %v687 = vpow.pop %v686
      %v688 = vmul.f32 %v685, 1.442695
      %v689 = vpow.pop %v688
      %v690 = vadd.f32 %v687, 1.0
      %v691 = vadd.f32 %v689, 1.0
      %v692 = vrcp.pop %v690
      %v693 = vmul.f32 %v690, %v692
      %v694 = vsub.f32 1.0, %v693
      %v695 = vmul.f32 %v692, %v694
      %v696 = vadd.f32 %v692, %v695
      %vm697 = vweird.f32 %v690
      %vm698 = vweird.f32 %v692
      %vm699 = vmor %vm697, %vm698
      %v700 = vsel %vm699, %v692, %v696
      %v701 = vand.u32 2147483647, %v690
      %vm702 = vcmp.eq.f32.partialorder %v701, 8.507059e+37
      %v703 = vand.u32 %v690, 2147483648
      %v704 = vor.u32 1.1754944e-38, %v703
      %v705 = vsel %vm702, %v704, %v700
      %v706 = vmul.f32 1.0, %v705
      %v707 = vrcp.pop %v691
      %v708 = vmul.f32 %v691, %v707
      %v709 = vsub.f32 1.0, %v708
      %v710 = vmul.f32 %v707, %v709
      %v711 = vadd.f32 %v707, %v710
      %vm712 = vweird.f32 %v691
      %vm713 = vweird.f32 %v707
      %vm714 = vmor %vm712, %vm713
      %v715 = vsel %vm714, %v707, %v711
      %v716 = vand.u32 2147483647, %v691
      %vm717 = vcmp.eq.f32.partialorder %v716, 8.507059e+37
      %v718 = vand.u32 %v691, 2147483648
      %v719 = vor.u32 1.1754944e-38, %v718
      %v720 = vsel %vm717, %v719, %v715
      %v721 = vmul.f32 1.0, %v720
      %v724 = vrot.slane %v721, 6
      %v725 = vsel %vm101, %v706, %v724
      %727 = vst [vmem:[#allocation8] sm:$0xf] %v725
    $region25: #{tpu_custom_call.1} parent=1 // pred_fallthru
      _
    // Predicated region
    $region26: #{tpu_custom_call.1} parent=1 // pred_check
      _
    $region27: #{tpu_custom_call.1} parent=1 // pred_check_branch
      %729 = sbr.rel (0) target = $region29
    $region28: #{tpu_custom_call.1} parent=1 // pred_region
      %731 = vsyncadd [#allocation5], 0
      %s733 = sshll.u32 [#allocation8], 4
      %s734 = int_to_ptr.vmem [resolvable:$true] %s733
      %s735 = sshll.u32 %s2, 4
      %s736 = int_to_ptr.hbm [resolvable:$true] %s735
      %738 = dma.vmem_to_hbm [thread:$0]  %s734, 64, %s736, [#allocation5]
    $region29: #{tpu_custom_call.1} parent=1 // pred_fallthru
      _
    // Predicated region
    $region30: #{tpu_custom_call.1} parent=1 // pred_check
      _
    $region31: #{tpu_custom_call.1} parent=1 // pred_check_branch
      %740 = sbr.rel (0) target = $region33
    $region32: #{tpu_custom_call.1} parent=1 // pred_region
      %742 = dma.done [#allocation5], 64
    $region33: #{tpu_custom_call.1} parent=1 // pred_fallthru
      _
    %743 = vsyncpa [#allocation4], 1
    %744 = vsyncpa [#allocation7], 1
    %745 = vsyncpa [#allocation5], 1

</llo_original>
